<compile_context>
chip_gen: v7x
topology: tpu7x:2x2x1
jax: 0.10.0
libtpu: 0.0.40
codegen_flags: <defaults>
</compile_context>

<pallas_src>
import functools

import jax
import jax.numpy as jnp
from jax.experimental import pallas as pl
from jax.experimental.pallas import tpu as pltpu


def _snowmap_kernel(green_ref, swir1_ref, nir_ref, out_ref, *, snow, snow_free):
    # Cast in-kernel so narrow sensor dtypes are only widened in VMEM.
    g = green_ref[...].astype(jnp.float32)
    s = swir1_ref[...].astype(jnp.float32)
    n = nir_ref[...].astype(jnp.float32)
    # Normalized Difference Snow Index (exact divide -> reference NaN/inf semantics).
    ndsi = (g - s) / (g + s)
    mask = (ndsi > 0.4) & (n > 0.11)
    out_ref[...] = jnp.where(mask, jnp.float32(snow), jnp.float32(snow_free))


def _pick_tile(dim, target, align):
    """Largest legal block extent: full dim if it fits, else an `align` multiple <= target."""
    if dim <= target:
        return dim                      # full extent always satisfies the (8,128) rule
    t = (target // align) * align
    return max(align, t)


def snowmap_forward(x, bands, snow=1, snow_free=0, *, tile_h=256, tile_w=1024):
    """SNOWMAP binary snow classification.

    Parameters
    ----------
    x : jnp.ndarray, shape (B, C, H, W)  # NCHW layout, like the PyTorch module
    bands : list[str] naming the channel order of ``x`` (needs green/swir1/nir).

    Returns
    -------
    jnp.ndarray of shape (B, H, W), float32, values in {snow_free, snow}.
    """
    assert x.ndim == 4, "expected 4-D (batch, bands, height, width) input"
    b_idx = {b: i for i, b in enumerate(bands)}
    green_c, swir1_c, nir_c = b_idx["green"], b_idx["swir1"], b_idx["nir"]

    B, C, H, W = x.shape
    th = _pick_tile(H, tile_h, 8)       # sublane-aligned
    tw = _pick_tile(W, tile_w, 128)     # lane-dense output stores
    grid = (B, pl.cdiv(H, th), pl.cdiv(W, tw))

    def band_spec(ch):
        # Squeezed batch & channel dims (block size 1) -> kernel sees (th, tw).
        return pl.BlockSpec(
            (None, None, th, tw),
            lambda b, i, j, ch=ch: (b, ch, i, j),
        )

    out_spec = pl.BlockSpec((None, th, tw), lambda b, i, j: (b, i, j))

    kernel = functools.partial(_snowmap_kernel, snow=snow, snow_free=snow_free)

    return pl.pallas_call(
        kernel,
        out_shape=jax.ShapeDtypeStruct((B, H, W), jnp.float32),
        grid=grid,
        in_specs=[band_spec(green_c), band_spec(swir1_c), band_spec(nir_c)],
        out_specs=out_spec,
        compiler_params=pltpu.CompilerParams(
            dimension_semantics=("parallel", "parallel", "parallel")),
    )(x, x, x)


def snowmap_reference(x, bands, snow=1, snow_free=0):
    """Pure-JAX reference mirroring the PyTorch forward."""
    b_idx = {b: i for i, b in enumerate(bands)}
    green = x[:, b_idx["green"]].astype(jnp.float32)
    swir1 = x[:, b_idx["swir1"]].astype(jnp.float32)
    nir = x[:, b_idx["nir"]].astype(jnp.float32)
    ndsi = (green - swir1) / (green + swir1)
    out = jnp.full(ndsi.shape, float(snow_free), dtype=jnp.float32)
    return jnp.where((ndsi > 0.4) & (nir > 0.11), float(snow), out)


if __name__ == "__main__":
    key = jax.random.PRNGKey(0)
    bands = ["red", "green", "nir", "swir1"]

    # --- Check 1: module-sized toy input (single grid block per batch). ---
    B, C, H, W = 2, 4, 16, 16
    k1, k2 = jax.random.split(key)
    x = jax.random.uniform(k1, (B, C, H, W), dtype=jnp.float32,
                           minval=0.01, maxval=1.0)
    out = jax.block_until_ready(snowmap_forward(x, bands, snow=1, snow_free=0))
    ref = jax.block_until_ready(snowmap_reference(x, bands, snow=1, snow_free=0))
    assert out.shape == (B, H, W)
    assert out.dtype == jnp.float32
    assert bool(jnp.all(out == ref))

    # --- Check 2: multi-block tiling path (grid = (1, 3, 2)). ---
    B2, H2, W2 = 1, 24, 256
    x2 = jax.random.uniform(k2, (B2, C, H2, W2), dtype=jnp.float32,
                            minval=0.01, maxval=1.0)
    out2 = jax.block_until_ready(
        snowmap_forward(x2, bands, snow=1, snow_free=0, tile_h=8, tile_w=128))
    ref2 = jax.block_until_ready(snowmap_reference(x2, bands, snow=1, snow_free=0))
    assert out2.shape == (B2, H2, W2)
    assert bool(jnp.all(out2 == ref2))

    print("KERNEL_OK")
</pallas_src>

<mosaic_0001>
module attributes {stable_mosaic.version = 11 : i64} {
  func.func @_snowmap_kernel(%arg0: i32, %arg1: i32, %arg2: i32, %arg3: memref<1x1x16x16xf32, #tpu.memory_space<vmem>>, %arg4: memref<1x1x16x16xf32, #tpu.memory_space<vmem>>, %arg5: memref<1x1x16x16xf32, #tpu.memory_space<vmem>>, %arg6: memref<1x16x16xf32, #tpu.memory_space<vmem>>) attributes {dimension_semantics = [#tpu.dimension_semantics<parallel>, #tpu.dimension_semantics<parallel>, #tpu.dimension_semantics<parallel>], iteration_bounds = array<i64: 2, 1, 1>, scalar_prefetch = 0 : i64, scratch_operands = 0 : i64, tpu.core_type = #tpu.core_type<tc>, window_params = [{transform_indices = @transform_0, window_bounds = array<i64: 1, 1, 16, 16>}, {transform_indices = @transform_1, window_bounds = array<i64: 1, 1, 16, 16>}, {transform_indices = @transform_2, window_bounds = array<i64: 1, 1, 16, 16>}, {transform_indices = @transform_3, window_bounds = array<i64: 1, 16, 16>}]} {
    %c0 = arith.constant 0 : index
    %c0_0 = arith.constant 0 : index
    %c0_1 = arith.constant 0 : index
    %c0_2 = arith.constant 0 : index
    %0 = vector.load %arg3[%c0, %c0_0, %c0_1, %c0_2] : memref<1x1x16x16xf32, #tpu.memory_space<vmem>>, vector<1x1x16x16xf32>
    %1 = vector.shape_cast %0 : vector<1x1x16x16xf32> to vector<16x16xf32>
    %c0_3 = arith.constant 0 : index
    %c0_4 = arith.constant 0 : index
    %c0_5 = arith.constant 0 : index
    %c0_6 = arith.constant 0 : index
    %2 = vector.load %arg4[%c0_3, %c0_4, %c0_5, %c0_6] : memref<1x1x16x16xf32, #tpu.memory_space<vmem>>, vector<1x1x16x16xf32>
    %3 = vector.shape_cast %2 : vector<1x1x16x16xf32> to vector<16x16xf32>
    %c0_7 = arith.constant 0 : index
    %c0_8 = arith.constant 0 : index
    %c0_9 = arith.constant 0 : index
    %c0_10 = arith.constant 0 : index
    %4 = vector.load %arg5[%c0_7, %c0_8, %c0_9, %c0_10] : memref<1x1x16x16xf32, #tpu.memory_space<vmem>>, vector<1x1x16x16xf32>
    %5 = vector.shape_cast %4 : vector<1x1x16x16xf32> to vector<16x16xf32>
    %6 = arith.subf %1, %3 : vector<16x16xf32>
    %7 = arith.addf %1, %3 : vector<16x16xf32>
    %8 = arith.divf %6, %7 : vector<16x16xf32>
    %cst = arith.constant 4.000000e-01 : f32
    %9 = vector.broadcast %cst : f32 to vector<16x16xf32>
    %10 = arith.cmpf ogt, %8, %9 : vector<16x16xf32>
    %cst_11 = arith.constant 1.100000e-01 : f32
    %11 = vector.broadcast %cst_11 : f32 to vector<16x16xf32>
    %12 = arith.cmpf ogt, %5, %11 : vector<16x16xf32>
    %13 = arith.andi %10, %12 : vector<16x16xi1>
    %cst_12 = arith.constant 1.000000e+00 : f32
    %cst_13 = arith.constant 0.000000e+00 : f32
    %14 = vector.broadcast %cst_12 : f32 to vector<16x16xf32>
    %15 = vector.broadcast %cst_13 : f32 to vector<16x16xf32>
    %16 = arith.select %13, %14, %15 : vector<16x16xi1>, vector<16x16xf32>
    %c0_14 = arith.constant 0 : index
    %c0_15 = arith.constant 0 : index
    %c0_16 = arith.constant 0 : index
    %17 = vector.load %arg6[%c0_14, %c0_15, %c0_16] : memref<1x16x16xf32, #tpu.memory_space<vmem>>, vector<1x16x16xf32>
    %18 = vector.shape_cast %17 : vector<1x16x16xf32> to vector<16x16xf32>
    %19 = vector.shape_cast %16 : vector<16x16xf32> to vector<1x16x16xf32>
    tpu.vector_store %arg6[%c0_14, %c0_15, %c0_16], %19 {strides = array<i32>} : memref<1x16x16xf32, #tpu.memory_space<vmem>>, vector<1x16x16xf32>,
    return
  }
  func.func @transform_0(%arg0: i32, %arg1: i32, %arg2: i32) -> (i32, i32, i32, i32) {
    %c1_i32 = arith.constant 1 : i32
    %c0_i32 = arith.constant 0 : i32
    return %arg0, %c1_i32, %arg1, %arg2 : i32, i32, i32, i32
  }
  func.func @transform_1(%arg0: i32, %arg1: i32, %arg2: i32) -> (i32, i32, i32, i32) {
    %c3_i32 = arith.constant 3 : i32
    %c0_i32 = arith.constant 0 : i32
    return %arg0, %c3_i32, %arg1, %arg2 : i32, i32, i32, i32
  }
  func.func @transform_2(%arg0: i32, %arg1: i32, %arg2: i32) -> (i32, i32, i32, i32) {
    %c2_i32 = arith.constant 2 : i32
    %c0_i32 = arith.constant 0 : i32
    return %arg0, %c2_i32, %arg1, %arg2 : i32, i32, i32, i32
  }
  func.func @transform_3(%arg0: i32, %arg1: i32, %arg2: i32) -> (i32, i32, i32) {
    %c0_i32 = arith.constant 0 : i32
    return %arg0, %arg1, %arg2 : i32, i32, i32
  }
}

</mosaic_0001>

<llo_original>
// kernel: tpu_custom_call.1
$region0: #{tpu_custom_call.1}
  #allocation0 [shape = 'u32[]', space=smem, size = 0x4, offset = 0x4, fixed_abs, tag = 'smem constant byte address 0x4 - core index']
  #allocation1 [shape = 'u32[144,128]{1,0:T(1,128)}', space=vmem, size = 0x12000, scoped, tag = 'internal scratch']
  %s0 = inlined_call_operand.hbm [shape: f32[2,4,16,16], index: 0, kind: input, shape index: {}]
  %s1 = inlined_call_operand.hbm [shape: f32[2,4,16,16], index: 1, kind: input, shape index: {}]
  %s2 = inlined_call_operand.hbm [shape: f32[2,4,16,16], index: 2, kind: input, shape index: {}]
  %s3 = inlined_call_operand.hbm [shape: f32[2,16,16], index: 3, kind: output, shape index: {}]
  %s4 = sld [smem:[#allocation0]]
  $region57: #{tpu_custom_call.1} parent=0
    _
  %s6 = ssub.s32 1, %s4
  %s7 = scalar_select 0, %s6, %s4
  $region1: #{tpu_custom_call.1} parent=0
    #allocation2 [shape = 'u8[16384]{0}', space=vmem, size = 0x4000, scoped, tag = 'input window, operand 0']
    #allocation3 [shape = 's32[2]{0}', space=sflag, size = 0x8, scoped, tag = 'scoped memory for tpu_custom_call.1']
    #allocation4 [shape = 's32[2]{0}', space=sflag, size = 0x8, scoped, tag = 'scoped memory for tpu_custom_call.1']
    #allocation5 [shape = 'u8[16384]{0}', space=vmem, size = 0x4000, scoped, tag = 'input window, operand 1']
    #allocation6 [shape = 's32[2]{0}', space=sflag, size = 0x8, scoped, tag = 'scoped memory for tpu_custom_call.1']
    #allocation7 [shape = 'u8[16384]{0}', space=vmem, size = 0x4000, scoped, tag = 'input window, operand 2']
    #allocation8 [shape = 'u8[16384]{0}', space=vmem, size = 0x4000, scoped, tag = 'output window, operand 0']
    %8 = vsyncpa [#allocation3], 0
    %s9 = scalar_lea.sflag [#allocation3], 1
    %10 = vsyncpa %s9, 0
    %11 = vsyncpa [#allocation6], 0
    %s12 = scalar_lea.sflag [#allocation6], 1
    %13 = vsyncpa %s12, 0
    %14 = vsyncpa [#allocation4], 0
    %s15 = scalar_lea.sflag [#allocation4], 1
    %16 = vsyncpa %s15, 0
    loop: start=0, step=1, limit=4
    $region2: #{tpu_custom_call.1} parent=1 // loop_pre_header
      _
    $region3: #{tpu_custom_call.1} parent=1 // loop_header
      %s18 = sphi 0, %s22
      %p19 = scmp.ge.s32.totalorder %s18, 4
      %s25 = sphi 0, %s44
      %s26 = sphi 0, %s40
      %s27 = sphi 0, %s36
      %s28 = sphi 0, %s25
      %s29 = sphi 0, %s26
      %s30 = sphi 0, %s27
      %s31 = sphi 0, %s28
      %s32 = sphi 0, %s29
      %s33 = sphi 0, %s30
      %s51 = sphi 0, %s53
      %s54 = sphi 0, %s51
      %s55 = sphi 0, %s54
      %s71 = sphi 0, %s55
      %s81 = sphi 0, %s83
      %s84 = sphi 0, %s81
      %s85 = sphi 0, %s84
      %s101 = sphi 0, %s85
      %s111 = sphi 0, %s113
      %s114 = sphi 0, %s111
      %s115 = sphi 0, %s114
      %s131 = sphi 0, %s115
      %s141 = sphi 0, %s143
      %s144 = sphi 0, %s141
      %s145 = sphi 0, %s144
      %s161 = sphi 0, %s145
    $region4: #{tpu_custom_call.1} parent=1 // loop_header_branch
      %21 = sbr.rel (%p19) target = $region8
    $region5: #{tpu_custom_call.1} parent=1 // loop_body
      %s23 = ssub.s32 %s18, 1
      %s24 = ssub.s32 %s18, 2
      %s34 = sadd.s32 1, %s27
      %p35 = scmp.ge.s32.totalorder %s34, 1
      %s36 = scalar_select %p35, 0, %s34
      %s37 = sadd.s32 1, %s26
      %s38 = scalar_select %p35, %s37, %s26
      %p39 = scmp.ge.s32.totalorder %s38, 1
      %s40 = scalar_select %p39, 0, %s38
      %s41 = sadd.s32 1, %s25
      %s42 = scalar_select %p39, %s41, %s25
      %p43 = scmp.ge.s32.totalorder %s42, 2
      %s44 = scalar_select %p43, 0, %s42
      %s45 = ssub.s32 %s25, %s44
      %s46 = ssub.s32 %s26, %s40
      %s47 = sor.u32 %s45, %s46
      %s48 = ssub.s32 %s27, %s36
      %s49 = sor.u32 %s47, %s48
      %p50 = scmp.eq.s32.totalorder %s49, 0
      %s52 = sadd.s32 %s51, 1
      %s53 = scalar_select %p50, %s51, %s52
      %p56 = pneg %p50
      %p57 = scmp.eq.s32.totalorder %s18, 1
      %p58 = por %p56, %p57
      %p59 = scmp.ne.s32.totalorder %s51, %s54
      %p60 = scmp.eq.s32.totalorder %s18, 0
      %p61 = por %p59, %p60
      %p62 = scmp.ne.s32.totalorder %s51, %s54
      %p63 = scmp.eq.s32.totalorder %s23, 1
      %p64 = por %p62, %p63
      %p65 = scmp.ne.s32.totalorder %s54, %s55
      %p66 = scmp.eq.s32.totalorder %s23, 0
      %p67 = por %p65, %p66
      %p68 = scmp.ne.s32.totalorder %s54, %s55
      %p69 = scmp.eq.s32.totalorder %s24, 1
      %p70 = por %p68, %p69
      %p72 = scmp.ne.s32.totalorder %s55, %s71
      %p73 = scmp.eq.s32.totalorder %s24, 0
      %p74 = por %p72, %p73
      %s75 = ssub.s32 %s25, %s44
      %s76 = ssub.s32 %s26, %s40
      %s77 = sor.u32 %s75, %s76
      %s78 = ssub.s32 %s27, %s36
      %s79 = sor.u32 %s77, %s78
      %p80 = scmp.eq.s32.totalorder %s79, 0
      %s82 = sadd.s32 %s81, 1
      %s83 = scalar_select %p80, %s81, %s82
      %p86 = pneg %p80
      %p87 = scmp.eq.s32.totalorder %s18, 1
      %p88 = por %p86, %p87
      %p89 = scmp.ne.s32.totalorder %s81, %s84
      %p90 = scmp.eq.s32.totalorder %s18, 0
      %p91 = por %p89, %p90
      %p92 = scmp.ne.s32.totalorder %s81, %s84
      %p93 = scmp.eq.s32.totalorder %s23, 1
      %p94 = por %p92, %p93
      %p95 = scmp.ne.s32.totalorder %s84, %s85
      %p96 = scmp.eq.s32.totalorder %s23, 0
      %p97 = por %p95, %p96
      %p98 = scmp.ne.s32.totalorder %s84, %s85
      %p99 = scmp.eq.s32.totalorder %s24, 1
      %p100 = por %p98, %p99
      %p102 = scmp.ne.s32.totalorder %s85, %s101
      %p103 = scmp.eq.s32.totalorder %s24, 0
      %p104 = por %p102, %p103
      %s105 = ssub.s32 %s25, %s44
      %s106 = ssub.s32 %s26, %s40
      %s107 = sor.u32 %s105, %s106
      %s108 = ssub.s32 %s27, %s36
      %s109 = sor.u32 %s107, %s108
      %p110 = scmp.eq.s32.totalorder %s109, 0
      %s112 = sadd.s32 %s111, 1
      %s113 = scalar_select %p110, %s111, %s112
      %p116 = pneg %p110
      %p117 = scmp.eq.s32.totalorder %s18, 1
      %p118 = por %p116, %p117
      %p119 = scmp.ne.s32.totalorder %s111, %s114
      %p120 = scmp.eq.s32.totalorder %s18, 0
      %p121 = por %p119, %p120
      %p122 = scmp.ne.s32.totalorder %s111, %s114
      %p123 = scmp.eq.s32.totalorder %s23, 1
      %p124 = por %p122, %p123
      %p125 = scmp.ne.s32.totalorder %s114, %s115
      %p126 = scmp.eq.s32.totalorder %s23, 0
      %p127 = por %p125, %p126
      %p128 = scmp.ne.s32.totalorder %s114, %s115
      %p129 = scmp.eq.s32.totalorder %s24, 1
      %p130 = por %p128, %p129
      %p132 = scmp.ne.s32.totalorder %s115, %s131
      %p133 = scmp.eq.s32.totalorder %s24, 0
      %p134 = por %p132, %p133
      %s135 = ssub.s32 %s25, %s44
      %s136 = ssub.s32 %s26, %s40
      %s137 = sor.u32 %s135, %s136
      %s138 = ssub.s32 %s27, %s36
      %s139 = sor.u32 %s137, %s138
      %p140 = scmp.eq.s32.totalorder %s139, 0
      %s142 = sadd.s32 %s141, 1
      %s143 = scalar_select %p140, %s141, %s142
      %p146 = pneg %p140
      %p147 = scmp.eq.s32.totalorder %s18, 1
      %p148 = por %p146, %p147
      %p149 = scmp.ne.s32.totalorder %s141, %s144
      %p150 = scmp.eq.s32.totalorder %s18, 0
      %p151 = por %p149, %p150
      %p152 = scmp.ne.s32.totalorder %s141, %s144
      %p153 = scmp.eq.s32.totalorder %s23, 1
      %p154 = por %p152, %p153
      %p155 = scmp.ne.s32.totalorder %s144, %s145
      %p156 = scmp.eq.s32.totalorder %s23, 0
      %p157 = por %p155, %p156
      %p158 = scmp.ne.s32.totalorder %s144, %s145
      %p159 = scmp.eq.s32.totalorder %s24, 1
      %p160 = por %p158, %p159
      %p162 = scmp.ne.s32.totalorder %s145, %s161
      %p163 = scmp.eq.s32.totalorder %s24, 0
      %p164 = por %p162, %p163
      %p165 = scmp.le.s32.totalorder 1, %s18
      %p166 = scmp.lt.s32.totalorder %s18, 3
      %p167 = pnand %p165, %p166
      %p168 = pneg %p167
      // Predicated region
      $region9: #{tpu_custom_call.1} parent=5 // pred_check
        _
      $region10: #{tpu_custom_call.1} parent=5 // pred_check_branch
        %170 = sbr.rel (%p167) target = $region12
      $region11: #{tpu_custom_call.1} parent=5 // pred_region
        %s171 = ssub.s32 %s18, 1
      $region12: #{tpu_custom_call.1} parent=5 // pred_fallthru
        _
      %p172 = scmp.lt.s32.totalorder %s18, 2
      // Predicated region
      $region13: #{tpu_custom_call.1} parent=5 // pred_check
        %p173 = pneg %p172
      $region14: #{tpu_custom_call.1} parent=5 // pred_check_branch
        %175 = sbr.rel (%p173) target = $region16
      $region15: #{tpu_custom_call.1} parent=5 // pred_region
        // Predicated region
        $region17: #{tpu_custom_call.1} parent=15 // pred_check
          %p176 = pneg %p61
        $region18: #{tpu_custom_call.1} parent=15 // pred_check_branch
          %178 = sbr.rel (%p176) target = $region20
        $region19: #{tpu_custom_call.1} parent=15 // pred_region
          %s179 = sand.u32 %s51, 1
          %s180 = scalar_lea.sflag [#allocation3], %s179
          %s181 = sand.u32 %s51, 1
          %s182 = smul.addr %s181, 16
          %s183 = scalar_lea.vmem [#allocation2], %s182
          %s184 = smul.u32 2, %s26
          %s186 = ssub.s32 256, 256
          %187 = vsyncadd %s180, %s186
          %s188 = sadd.s32 %s27, %s184
          %s189 = sadd.s32 %s188, 2
          %s190 = smul.addr %s25, 8
          %s191 = sadd.s32 %s189, %s190
          %s192 = smul.addr %s191, 128
          %s193 = scalar_lea.hbm %s0, %s192
          %s194 = sshll.u32 %s183, 4
          %s195 = int_to_ptr.vmem [resolvable:$true] %s194
          %200 = dma.hbm_to_vmem [thread:$0]  %s193, 256, %s195, %s180, 128, 128, 8
        $region20: #{tpu_custom_call.1} parent=15 // pred_fallthru
          _
        // Predicated region
        $region21: #{tpu_custom_call.1} parent=15 // pred_check
          %p201 = pneg %p91
        $region22: #{tpu_custom_call.1} parent=15 // pred_check_branch
          %203 = sbr.rel (%p201) target = $region24
        $region23: #{tpu_custom_call.1} parent=15 // pred_region
          %s204 = sand.u32 %s18, 1
          %s205 = scalar_lea.sflag [#allocation6], %s204
          %s206 = sand.u32 %s81, 1
          %s207 = smul.addr %s206, 16
          %s208 = scalar_lea.vmem [#allocation5], %s207
          %s209 = smul.u32 2, %s26
          %s211 = ssub.s32 256, 256
          %212 = vsyncadd %s205, %s211
          %s213 = sadd.s32 %s27, %s209
          %s214 = sadd.s32 %s213, 6
          %s215 = smul.addr %s25, 8
          %s216 = sadd.s32 %s214, %s215
          %s217 = smul.addr %s216, 128
          %s218 = scalar_lea.hbm %s1, %s217
          %s219 = sshll.u32 %s208, 4
          %s220 = int_to_ptr.vmem [resolvable:$true] %s219
          %225 = dma.hbm_to_vmem [thread:$0]  %s218, 256, %s220, %s205, 128, 128, 8
        $region24: #{tpu_custom_call.1} parent=15 // pred_fallthru
          _
        // Predicated region
        $region25: #{tpu_custom_call.1} parent=15 // pred_check
          %p226 = pneg %p121
        $region26: #{tpu_custom_call.1} parent=15 // pred_check_branch
          %228 = sbr.rel (%p226) target = $region28
        $region27: #{tpu_custom_call.1} parent=15 // pred_region
          %s229 = sand.u32 %s18, 1
          %s230 = scalar_lea.sflag [#allocation6], %s229
          %s231 = sand.u32 %s111, 1
          %s232 = smul.addr %s231, 16
          %s233 = scalar_lea.vmem [#allocation7], %s232
          %s234 = smul.u32 2, %s26
          %s236 = ssub.s32 256, 256
          %237 = vsyncadd %s230, %s236
          %s238 = sadd.s32 %s27, %s234
          %s239 = sadd.s32 %s238, 4
          %s240 = smul.addr %s25, 8
          %s241 = sadd.s32 %s239, %s240
          %s242 = smul.addr %s241, 128
          %s243 = scalar_lea.hbm %s2, %s242
          %s244 = sshll.u32 %s233, 4
          %s245 = int_to_ptr.vmem [resolvable:$true] %s244
          %250 = dma.hbm_to_vmem [thread:$0]  %s243, 256, %s245, %s230, 128, 128, 8
        $region28: #{tpu_custom_call.1} parent=15 // pred_fallthru
          _
      $region16: #{tpu_custom_call.1} parent=5 // pred_fallthru
        _
      %p251 = scmp.le.s32.totalorder 1, %s18
      %p252 = scmp.lt.s32.totalorder %s18, 3
      %p253 = pnand %p251, %p252
      %p254 = pneg %p253
      // Predicated region
      $region29: #{tpu_custom_call.1} parent=5 // pred_check
        _
      $region30: #{tpu_custom_call.1} parent=5 // pred_check_branch
        %256 = sbr.rel (%p253) target = $region32
      $region31: #{tpu_custom_call.1} parent=5 // pred_region
        %s257 = ssub.s32 %s18, 1
        %s258 = sand.u32 %s54, 1
        %s259 = scalar_lea.sflag [#allocation3], %s258
        %s260 = sand.u32 %s54, 1
        %s261 = smul.addr %s260, 16
        %s262 = scalar_lea.vmem [#allocation2], %s261
        // Predicated region
        $region33: #{tpu_custom_call.1} parent=31 // pred_check
          %p263 = pneg %p67
        $region34: #{tpu_custom_call.1} parent=31 // pred_check_branch
          %265 = sbr.rel (%p263) target = $region36
        $region35: #{tpu_custom_call.1} parent=31 // pred_region
          %266 = dma.done %s259, 256
        $region36: #{tpu_custom_call.1} parent=31 // pred_fallthru
          _
        %s267 = sand.u32 %s23, 1
        %s268 = scalar_lea.sflag [#allocation6], %s267
        %s269 = sand.u32 %s84, 1
        %s270 = smul.addr %s269, 16
        %s271 = scalar_lea.vmem [#allocation5], %s270
        // Predicated region
        $region37: #{tpu_custom_call.1} parent=31 // pred_check
          %p272 = pneg %p97
        $region38: #{tpu_custom_call.1} parent=31 // pred_check_branch
          %274 = sbr.rel (%p272) target = $region40
        $region39: #{tpu_custom_call.1} parent=31 // pred_region
          %275 = dma.done %s268, 256
        $region40: #{tpu_custom_call.1} parent=31 // pred_fallthru
          _
        %s276 = sand.u32 %s23, 1
        %s277 = scalar_lea.sflag [#allocation6], %s276
        %s278 = sand.u32 %s114, 1
        %s279 = smul.addr %s278, 16
        %s280 = scalar_lea.vmem [#allocation7], %s279
        // Predicated region
        $region41: #{tpu_custom_call.1} parent=31 // pred_check
          %p281 = pneg %p127
        $region42: #{tpu_custom_call.1} parent=31 // pred_check_branch
          %283 = sbr.rel (%p281) target = $region44
        $region43: #{tpu_custom_call.1} parent=31 // pred_region
          %284 = dma.done %s277, 256
        $region44: #{tpu_custom_call.1} parent=31 // pred_fallthru
          _
        %s285 = sand.u32 %s54, 1
        %s286 = scalar_lea.sflag [#allocation3], %s285
        %s287 = sand.u32 %s54, 1
        %s288 = smul.addr %s287, 16
        %s289 = scalar_lea.vmem [#allocation2], %s288
        %p290 = pneg %p67
        %p291 = pneg %p64
        %s292 = sand.u32 %s23, 1
        %s293 = scalar_lea.sflag [#allocation6], %s292
        %s294 = sand.u32 %s84, 1
        %s295 = smul.addr %s294, 16
        %s296 = scalar_lea.vmem [#allocation5], %s295
        %p297 = pneg %p97
        %p298 = pneg %p94
        %s299 = sand.u32 %s23, 1
        %s300 = scalar_lea.sflag [#allocation6], %s299
        %s301 = sand.u32 %s114, 1
        %s302 = smul.addr %s301, 16
        %s303 = scalar_lea.vmem [#allocation7], %s302
        %p304 = pneg %p127
        %p305 = pneg %p124
        %p306 = pneg %p157
        %p307 = pneg %p154
        %s308 = sand.u32 %s144, 1
        %s309 = scalar_lea.sflag [#allocation4], %s308
        %s310 = sand.u32 %s144, 1
        %s311 = smul.addr %s310, 16
        %s312 = scalar_lea.vmem [#allocation8], %s311
        %s313 = smul.u32 2, %s29
        %s314 = smul.u32 2, %s29
        %s315 = smul.u32 2, %s29
        %s316 = smul.u32 2, %s29
        %v317 = vld [vmem:[%s262] sm:$0xff]
        %v318 = vld [vmem:[%s262 + $0x8] sm:$0xff]
        %v319 = vld [vmem:[%s271] sm:$0xff]
        %v320 = vld [vmem:[%s271 + $0x8] sm:$0xff]
        %v321 = vld [vmem:[%s280] sm:$0xff]
        %v322 = vld [vmem:[%s280 + $0x8] sm:$0xff]
        %v323 = vsub.f32 %v317, %v319
        %v324 = vsub.f32 %v318, %v320
        %v325 = vadd.f32 %v317, %v319
        %v326 = vadd.f32 %v318, %v320
        %v327 = vrcp.pop %v325
        %v328 = vmul.f32 %v323, %v327
        %v329 = vrcp.pop %v326
        %v330 = vmul.f32 %v324, %v329
        %vm331 = vcmp.gt.f32.partialorder %v328, 0.4
        %vm332 = vcmp.gt.f32.partialorder %v330, 0.4
        %vm333 = vcmp.gt.f32.partialorder %v321, 0.11
        %vm334 = vcmp.gt.f32.partialorder %v322, 0.11
        %vm335 = vmand %vm331, %vm333
        %vm336 = vmand %vm332, %vm334
        %v337 = vsel %vm335, 1.0, 0.0
        %v338 = vsel %vm336, 1.0, 0.0
        %vm339 = vcmask 130048
        %340 = vst.msk [vmem:[%s312] sm:$0xff] %vm339, %v337
        %341 = vst.msk [vmem:[%s312 + $0x8] sm:$0xff] %vm339, %v338
        %s342 = sand.u32 %s144, 1
        %s343 = scalar_lea.sflag [#allocation4], %s342
        %s344 = sand.u32 %s144, 1
        %s345 = smul.addr %s344, 16
        %s346 = scalar_lea.vmem [#allocation8], %s345
        // Predicated region
        $region45: #{tpu_custom_call.1} parent=31 // pred_check
          %p347 = pneg %p154
        $region46: #{tpu_custom_call.1} parent=31 // pred_check_branch
          %349 = sbr.rel (%p347) target = $region48
        $region47: #{tpu_custom_call.1} parent=31 // pred_region
          %s350 = smul.u32 2, %s29
          %s352 = ssub.s32 256, 256
          %353 = vsyncadd %s343, %s352
          %s354 = sadd.s32 %s30, %s350
          %s355 = smul.addr %s28, 2
          %s356 = sadd.s32 %s354, %s355
          %s357 = smul.addr %s356, 128
          %s358 = scalar_lea.hbm %s3, %s357
          %s359 = sshll.u32 %s346, 4
          %s360 = int_to_ptr.vmem [resolvable:$true] %s359
          %365 = dma.vmem_to_hbm [thread:$0]  %s360, 256, %s358, %s343, 128, 128, 8
        $region48: #{tpu_custom_call.1} parent=31 // pred_fallthru
          _
      $region32: #{tpu_custom_call.1} parent=5 // pred_fallthru
        _
      %p366 = scmp.le.s32.totalorder 2, %s18
      // Predicated region
      $region49: #{tpu_custom_call.1} parent=5 // pred_check
        %p367 = pneg %p366
      $region50: #{tpu_custom_call.1} parent=5 // pred_check_branch
        %369 = sbr.rel (%p367) target = $region52
      $region51: #{tpu_custom_call.1} parent=5 // pred_region
        %s370 = ssub.s32 %s18, 2
        // Predicated region
        $region53: #{tpu_custom_call.1} parent=51 // pred_check
          %p371 = pneg %p160
        $region54: #{tpu_custom_call.1} parent=51 // pred_check_branch
          %373 = sbr.rel (%p371) target = $region56
        $region55: #{tpu_custom_call.1} parent=51 // pred_region
          %s374 = sand.u32 %s145, 1
          %s375 = scalar_lea.sflag [#allocation4], %s374
          %s376 = sand.u32 %s145, 1
          %s377 = smul.addr %s376, 16
          %s378 = scalar_lea.vmem [#allocation8], %s377
          %379 = dma.done %s375, 256
        $region56: #{tpu_custom_call.1} parent=51 // pred_fallthru
          _
      $region52: #{tpu_custom_call.1} parent=5 // pred_fallthru
        _
    $region6: #{tpu_custom_call.1} parent=1 // loop_footer
      %s22 = sadd.s32 1, %s18
    $region7: #{tpu_custom_call.1} parent=1 // loop_footer_branch
      %17 = sbr.rel target = $region3
    $region8: #{tpu_custom_call.1} parent=1 // loop_exit
      _
    %380 = vsyncpa [#allocation3], 1
    %s381 = scalar_lea.sflag [#allocation3], 1
    %382 = vsyncpa %s381, 1
    %383 = vsyncpa [#allocation6], 1
    %s384 = scalar_lea.sflag [#allocation6], 1
    %385 = vsyncpa %s384, 1
    %386 = vsyncpa [#allocation4], 1
    %s387 = scalar_lea.sflag [#allocation4], 1
    %388 = vsyncpa %s387, 1

</llo_original>
